<compile_context>
chip_gen: v7x
topology: tpu7x:2x2x1
jax: 0.10.0
libtpu: 0.0.40
codegen_flags: <defaults>
</compile_context>

<pallas_src>
import functools
import math

import jax
import jax.numpy as jnp
from jax.experimental import pallas as pl
from jax.experimental.pallas import tpu as pltpu


# ----------------------------------------------------------------------------
# Small helpers
# ----------------------------------------------------------------------------
def _round_up(n: int, m: int) -> int:
    return ((n + m - 1) // m) * m


def _next_pow2(n: int) -> int:
    n = max(1, int(n))
    return 1 << (n - 1).bit_length()


def _dft_window_basis(n_fft, win_type, norm):
    """(cos_w, sin_w), each [K, n_fft] float32, matching CausalSTFT.__init__."""
    K = n_fft // 2 + 1
    n = jnp.arange(n_fft, dtype=jnp.float32)
    k = jnp.arange(K, dtype=jnp.float32)

    if win_type is None:
        window = jnp.ones((n_fft,), dtype=jnp.float32)
    elif win_type == "hann":
        # torch.hann_window(N) (periodic): 0.5 - 0.5*cos(2*pi*n/N)
        window = 0.5 - 0.5 * jnp.cos(2.0 * math.pi * n / n_fft)
    else:
        raise ValueError(f"unsupported win_type: {win_type}")

    ang = (-2.0 * math.pi / n_fft) * k[:, None] * n[None, :]      # [K, n_fft]
    cos_w = jnp.cos(ang) * window[None, :]
    sin_w = jnp.sin(ang) * window[None, :]

    if norm == "forward":
        cos_w = cos_w / n_fft
        sin_w = sin_w / n_fft
    elif norm == "ortho":
        s = 1.0 / math.sqrt(n_fft)
        cos_w = cos_w * s
        sin_w = sin_w * s
    elif norm != "backward":
        raise ValueError(f"Unknown norm: {norm}")
    return cos_w, sin_w


def _default_vmem_budget():
    """Generation-aware scoped-VMEM budget (v5e/v6e: 128 MiB, v7x: 64 MiB)."""
    cap_bytes = 128 * 1024 * 1024
    try:
        cap_bytes = int(pltpu.get_tpu_info().vmem_capacity_bytes)
    except Exception:
        pass
    return max(16 * 1024 * 1024, min(int(0.75 * cap_bytes), 100 * 1024 * 1024))


def _vmem_bytes_estimate(tl, hop, r_halo, n_fft_pad, k, k_pad, w_bytes, out_bytes):
    """Rough per-step VMEM footprint used only to pick tile_l."""
    basis = 2 * (2 * k_pad) * n_fft_pad * w_bytes      # double-buffered basis
    x_main = 2 * tl * hop * 4                          # f32 signal tile (x2 buf)
    x_halo = 2 * r_halo * hop * 4
    out_blk = 2 * k * tl * out_bytes
    rows = (tl + r_halo) * hop * w_bytes               # in-kernel temporaries
    frames = tl * n_fft_pad * w_bytes
    acc = (2 * k_pad) * tl * 4
    mag = 3 * k * tl * 4
    return int(1.15 * (basis + x_main + x_halo + out_blk + rows + frames + acc + mag))


def _auto_tile_l(L, hop, r_halo, n_fft_pad, k, k_pad, w_bytes, out_bytes, budget):
    tl = _round_up(max(min(L, 1024), 128), 128)
    while tl > 128 and _vmem_bytes_estimate(tl, hop, r_halo, n_fft_pad, k, k_pad,
                                            w_bytes, out_bytes) > budget:
        tl -= 128
    return max(tl, 128)


# ----------------------------------------------------------------------------
# Pallas kernel: rebuild overlapping frames from a signal-row tile + halo,
# single fused NT MXU contraction against the K-major [cos ; sin] basis,
# magnitude, K-major masked store.
# ----------------------------------------------------------------------------
def _stft_mag_kernel(x_main_ref, x_halo_ref, w_ref, o_ref, *,
                     r, tile_l, k, k_pad, mxu_dtype):
    # rows[i, h] == x[b, (row0 + i) * hop + h] for this (batch, L-tile).
    main = x_main_ref[0].astype(mxu_dtype)                  # [tile_l, hop]
    halo = x_halo_ref[0].astype(mxu_dtype)                  # [r_halo, hop]

    if r == 1:
        frames = main                                       # [tile_l, hop]
    else:
        rows = jnp.concatenate([main, halo], axis=0)        # [tile_l+r_halo, hop]
        # frames[l, j*hop + h] = rows[l + j, h]  (static j, bf16 plumbing only)
        frames = jnp.concatenate(
            [rows[j:j + tile_l, :] for j in range(r)], axis=1)   # [tile_l, r*hop]

    # Single NT matmul: w[2*k_pad, r*hop] . frames[tile_l, r*hop]^T
    #   -> acc[2*k_pad, tile_l]  (K-major, no output transpose, f32 accumulate).
    acc = jax.lax.dot_general(
        w_ref[...], frames,
        dimension_numbers=(((1,), (1,)), ((), ())),
        preferred_element_type=jnp.float32)

    re = acc[:k, :]                                         # [k, tile_l]
    im = acc[k_pad:k_pad + k, :]                            # [k, tile_l] (aligned start)
    o_ref[0] = jnp.sqrt(re * re + im * im).astype(o_ref.dtype)


# ----------------------------------------------------------------------------
# Module-equivalent forward (magnitude=True)
# ----------------------------------------------------------------------------
def causal_stft_forward(x, *, n_fft, hop_size, win_type="hann", norm="backward",
                        compute_dtype=jnp.bfloat16, out_dtype=jnp.float32,
                        tile_l=None, vmem_limit_bytes=None):
    """x: [B, 1, T_in] or [B, T_in] -> [B, n_fft//2+1, L], L = (T_in-n_fft)//hop + 1."""
    if x.ndim == 3:
        assert x.shape[1] == 1
        x = x[:, 0, :]
    B, T_in = x.shape
    hop = int(hop_size)
    assert T_in >= n_fft
    K = n_fft // 2 + 1
    L = (T_in - n_fft) // hop + 1

    R = -(-n_fft // hop)                      # frame span in hop-rows (ceil)
    assert R <= 64, "hop_size too small relative to n_fft for this kernel"
    n_fft_pad = R * hop                       # basis zero-padded along time
    K_pad = _round_up(K, 8)                   # sublane-aligned frequency padding only

    r_halo = max(8, _next_pow2(max(R - 1, 1)))  # halo rows (pow2, >= 8, >= R-1)
    assert r_halo >= R - 1

    w_bytes = jnp.dtype(compute_dtype).itemsize
    out_bytes = jnp.dtype(out_dtype).itemsize
    if vmem_limit_bytes is None:
        vmem_limit_bytes = _default_vmem_budget()
    if tile_l is None:
        tl = _auto_tile_l(L, hop, r_halo, n_fft_pad, K, K_pad, w_bytes, out_bytes,
                          budget=int(0.8 * vmem_limit_bytes))
    else:
        tl = _round_up(max(int(tile_l), 128), 128)
    assert tl % r_halo == 0, (tl, r_halo)     # halo block indexing relies on this

    num_l_tiles = pl.cdiv(L, tl)
    L_pad = num_l_tiles * tl
    n_rows = L_pad + r_halo
    target_len = n_rows * hop
    assert target_len >= (L - 1) * hop + n_fft     # last valid frame fully covered
    assert num_l_tiles * tl + r_halo <= n_rows     # last halo block in-bounds

    # --- glue: keep signal float32 in HBM (accuracy); pad/trim, view as rows.
    xr = x.astype(jnp.float32)
    if T_in >= target_len:
        xr = xr[:, :target_len]
    else:
        xr = jnp.pad(xr, ((0, 0), (0, target_len - T_in)))
    xr = xr.reshape(B, n_rows, hop)

    # --- K-major packed [cos ; sin] windowed DFT basis: [2*K_pad, n_fft_pad].
    cos_w, sin_w = _dft_window_basis(n_fft, win_type, norm)
    w = jnp.zeros((2 * K_pad, n_fft_pad), dtype=jnp.float32)
    w = w.at[:K, :n_fft].set(cos_w)
    w = w.at[K_pad:K_pad + K, :n_fft].set(sin_w)
    w = w.astype(compute_dtype)

    halo_stride = tl // r_halo
    kernel = functools.partial(_stft_mag_kernel, r=R, tile_l=tl, k=K, k_pad=K_pad,
                               mxu_dtype=compute_dtype)

    out = pl.pallas_call(
        kernel,
        out_shape=jax.ShapeDtypeStruct((B, K, L), out_dtype),
        grid_spec=pltpu.PrefetchScalarGridSpec(
            num_scalar_prefetch=0,
            grid=(B, num_l_tiles),
            in_specs=[
                # main signal-row tile for this L-tile (f32 in HBM, cast in-kernel)
                pl.BlockSpec((1, tl, hop), lambda b, lt: (b, lt, 0)),
                # small halo: first r_halo rows past the end of this L-tile
                pl.BlockSpec((1, r_halo, hop),
                             lambda b, lt: (b, (lt + 1) * halo_stride, 0)),
                # packed K-major DFT basis, resident across the grid
                pl.BlockSpec((2 * K_pad, n_fft_pad), lambda b, lt: (0, 0)),
            ],
            # exact (B, K, L) output: partial last L-tile is masked on store,
            # so no post-kernel padding slice / extra HBM copy is needed.
            out_specs=pl.BlockSpec((1, K, tl), lambda b, lt: (b, 0, lt)),
        ),
        compiler_params=pltpu.CompilerParams(
            dimension_semantics=("parallel", "parallel"),
            vmem_limit_bytes=int(vmem_limit_bytes),
        ),
    )(xr, xr, w)

    return out


# ----------------------------------------------------------------------------
# Pure-JAX reference (conv1d-as-framed-matmul, like the PyTorch module)
# ----------------------------------------------------------------------------
def _reference_stft_mag(x, n_fft, hop, win_type, norm, quant_dtype=None):
    if x.ndim == 3:
        x = x[:, 0, :]
    B, T = x.shape
    L = (T - n_fft) // hop + 1
    cos_w, sin_w = _dft_window_basis(n_fft, win_type, norm)
    xr = x
    if quant_dtype is not None:
        xr = xr.astype(quant_dtype).astype(jnp.float32)
        cos_w = cos_w.astype(quant_dtype).astype(jnp.float32)
        sin_w = sin_w.astype(quant_dtype).astype(jnp.float32)
    idx = hop * jnp.arange(L)[:, None] + jnp.arange(n_fft)[None, :]
    fr = xr[:, idx]                                           # [B, L, n_fft]
    hi = jax.lax.Precision.HIGHEST
    re = jnp.einsum("bln,kn->bkl", fr, cos_w, precision=hi)
    im = jnp.einsum("bln,kn->bkl", fr, sin_w, precision=hi)
    return jnp.sqrt(re * re + im * im)                        # [B, K, L]


# ----------------------------------------------------------------------------
# Demo / self-check
# ----------------------------------------------------------------------------
if __name__ == "__main__":
    fwd = jax.jit(
        causal_stft_forward,
        static_argnames=("n_fft", "hop_size", "win_type", "norm",
                         "compute_dtype", "out_dtype", "tile_l",
                         "vmem_limit_bytes"),
    )

    key = jax.random.PRNGKey(0)
    configs = [
        # (n_fft, hop, B, L, win_type, norm, tile_l)
        (16, 4, 2, 200, "hann", "backward", 128),    # multiple L tiles + halo
        (20, 6, 1, 140, "hann", "ortho", 128),       # hop does not divide n_fft
        (128, 32, 1, 300, None, "backward", None),   # no window, auto tile size
        (256, 128, 1, 260, "hann", "backward", None),  # lane-aligned hop
    ]

    for n_fft, hop, B, L, win_type, norm, tl in configs:
        T_in = n_fft + hop * (L - 1)
        key, sub = jax.random.split(key)
        x = jax.random.normal(sub, (B, 1, T_in), dtype=jnp.float32)

        out = fwd(x, n_fft=n_fft, hop_size=hop, win_type=win_type, norm=norm,
                  tile_l=tl)
        out = jax.block_until_ready(out)
        assert out.shape == (B, n_fft // 2 + 1, L), out.shape

        # Tight check vs. a reference computed from the same bf16-quantized
        # operands (validates framing / indexing / layout exactly).
        ref_q = _reference_stft_mag(x, n_fft, hop, win_type, norm,
                                    quant_dtype=jnp.bfloat16)
        err_q = float(jnp.max(jnp.abs(out - ref_q)))
        assert err_q < 5e-3, ("quantized-ref mismatch", n_fft, hop, err_q)

        # Loose check vs. the full float32 reference (bf16 matmul rounding).
        ref_f = _reference_stft_mag(x, n_fft, hop, win_type, norm)
        err_f = float(jnp.max(jnp.abs(out - ref_f)))
        assert err_f < 0.05 * math.sqrt(n_fft), ("f32-ref mismatch", n_fft, hop, err_f)

    print("KERNEL_OK")
</pallas_src>

<mosaic_0001>
module attributes {stable_mosaic.version = 11 : i64} {
  func.func @_stft_mag_kernel(%arg0: i32, %arg1: i32, %arg2: memref<1x128x4xf32, #tpu.memory_space<vmem>>, %arg3: memref<1x8x4xf32, #tpu.memory_space<vmem>>, %arg4: memref<32x16xbf16, #tpu.memory_space<vmem>>, %arg5: memref<1x9x128xf32, #tpu.memory_space<vmem>>) attributes {dimension_semantics = [#tpu.dimension_semantics<parallel>, #tpu.dimension_semantics<parallel>], iteration_bounds = array<i64: 2, 2>, scalar_prefetch = 0 : i64, scratch_operands = 0 : i64, tpu.core_type = #tpu.core_type<tc>, window_params = [{transform_indices = @transform_0, window_bounds = array<i64: 1, 128, 4>}, {transform_indices = @transform_1, window_bounds = array<i64: 1, 8, 4>}, {pipeline_mode = #tpu.pipeline_mode<synchronous>, transform_indices = @transform_2, window_bounds = array<i64: 32, 16>}, {transform_indices = @transform_3, window_bounds = array<i64: 1, 9, 128>}]} {
    %c0 = arith.constant 0 : index
    %c0_0 = arith.constant 0 : index
    %c0_1 = arith.constant 0 : index
    %0 = vector.load %arg2[%c0, %c0_0, %c0_1] : memref<1x128x4xf32, #tpu.memory_space<vmem>>, vector<1x128x4xf32>
    %1 = vector.shape_cast %0 : vector<1x128x4xf32> to vector<128x4xf32>
    %2 = arith.truncf %1 : vector<128x4xf32> to vector<128x4xbf16>
    %c0_2 = arith.constant 0 : index
    %c0_3 = arith.constant 0 : index
    %c0_4 = arith.constant 0 : index
    %3 = vector.load %arg3[%c0_2, %c0_3, %c0_4] : memref<1x8x4xf32, #tpu.memory_space<vmem>>, vector<1x8x4xf32>
    %4 = vector.shape_cast %3 : vector<1x8x4xf32> to vector<8x4xf32>
    %5 = arith.truncf %4 : vector<8x4xf32> to vector<8x4xbf16>
    %6 = tpu.concatenate %2, %5 in 0 : vector<128x4xbf16>, vector<8x4xbf16> -> vector<136x4xbf16>
    %7 = vector.extract_strided_slice %6 {offsets = [0, 0], sizes = [128, 4], strides = [1, 1]} : vector<136x4xbf16> to vector<128x4xbf16>
    %8 = vector.extract_strided_slice %6 {offsets = [1, 0], sizes = [128, 4], strides = [1, 1]} : vector<136x4xbf16> to vector<128x4xbf16>
    %9 = vector.extract_strided_slice %6 {offsets = [2, 0], sizes = [128, 4], strides = [1, 1]} : vector<136x4xbf16> to vector<128x4xbf16>
    %10 = vector.extract_strided_slice %6 {offsets = [3, 0], sizes = [128, 4], strides = [1, 1]} : vector<136x4xbf16> to vector<128x4xbf16>
    %11 = tpu.concatenate %7, %8, %9, %10 in 1 : vector<128x4xbf16>, vector<128x4xbf16>, vector<128x4xbf16>, vector<128x4xbf16> -> vector<128x16xbf16>
    %c0_5 = arith.constant 0 : index
    %c0_6 = arith.constant 0 : index
    %12 = vector.load %arg4[%c0_5, %c0_6] : memref<32x16xbf16, #tpu.memory_space<vmem>>, vector<32x16xbf16>
    %cst = arith.constant dense<0.000000e+00> : vector<32x128xf32>
    %13 = tpu.matmul %12, %11, %cst {dimension_numbers = #tpu.dot_dimension_numbers<[1], [1], [0], [0], [0, 0, 1, 0], [], []>} : vector<32x16xbf16>, vector<128x16xbf16>, vector<32x128xf32> -> vector<32x128xf32>
    %14 = vector.extract_strided_slice %13 {offsets = [0, 0], sizes = [9, 128], strides = [1, 1]} : vector<32x128xf32> to vector<9x128xf32>
    %15 = vector.extract_strided_slice %13 {offsets = [16, 0], sizes = [9, 128], strides = [1, 1]} : vector<32x128xf32> to vector<9x128xf32>
    %16 = arith.mulf %14, %14 : vector<9x128xf32>
    %17 = arith.mulf %15, %15 : vector<9x128xf32>
    %18 = arith.addf %16, %17 : vector<9x128xf32>
    %19 = math.sqrt %18 : vector<9x128xf32>
    %c0_7 = arith.constant 0 : index
    %c0_8 = arith.constant 0 : index
    %c0_9 = arith.constant 0 : index
    %20 = vector.load %arg5[%c0_7, %c0_8, %c0_9] : memref<1x9x128xf32, #tpu.memory_space<vmem>>, vector<1x9x128xf32>
    %21 = vector.shape_cast %20 : vector<1x9x128xf32> to vector<9x128xf32>
    %22 = vector.shape_cast %19 : vector<9x128xf32> to vector<1x9x128xf32>
    tpu.vector_store %arg5[%c0_7, %c0_8, %c0_9], %22 {strides = array<i32>} : memref<1x9x128xf32, #tpu.memory_space<vmem>>, vector<1x9x128xf32>,
    return
  }
  func.func @transform_0(%arg0: i32, %arg1: i32) -> (i32, i32, i32) {
    %c0_i32 = arith.constant 0 : i32
    %c0_i32_0 = arith.constant 0 : i32
    return %arg0, %arg1, %c0_i32 : i32, i32, i32
  }
  func.func @transform_1(%arg0: i32, %arg1: i32) -> (i32, i32, i32) {
    %c1_i32 = arith.constant 1 : i32
    %0 = arith.addi %arg1, %c1_i32 : i32
    %c16_i32 = arith.constant 16 : i32
    %1 = arith.muli %0, %c16_i32 : i32
    %c0_i32 = arith.constant 0 : i32
    %c0_i32_0 = arith.constant 0 : i32
    return %arg0, %1, %c0_i32 : i32, i32, i32
  }
  func.func @transform_2(%arg0: i32, %arg1: i32) -> (i32, i32) {
    %c0_i32 = arith.constant 0 : i32
    %c0_i32_0 = arith.constant 0 : i32
    %c0_i32_1 = arith.constant 0 : i32
    return %c0_i32, %c0_i32_0 : i32, i32
  }
  func.func @transform_3(%arg0: i32, %arg1: i32) -> (i32, i32, i32) {
    %c0_i32 = arith.constant 0 : i32
    %c0_i32_0 = arith.constant 0 : i32
    return %arg0, %c0_i32, %arg1 : i32, i32, i32
  }
}

</mosaic_0001>

<llo_original>
// kernel: causal_stft_forward.1
$region0: #{causal_stft_forward.1}
  #allocation0 [shape = 'u32[]', space=smem, size = 0x4, offset = 0x4, fixed_abs, tag = 'smem constant byte address 0x4 - core index']
  #allocation1 [shape = 'u32[144,128]{1,0:T(1,128)}', space=vmem, size = 0x12000, scoped, tag = 'internal scratch']
  %s0 = inlined_call_operand.hbm [shape: f32[2,264,4], index: 0, kind: input, shape index: {}, may-alias: {0,1}]
  %s1 = inlined_call_operand.hbm [shape: f32[2,264,4], index: 1, kind: input, shape index: {}, may-alias: {0,1}]
  %s2 = inlined_call_operand.hbm [shape: bf16[32,16], index: 2, kind: input, shape index: {}]
  %s3 = inlined_call_operand.hbm [shape: f32[2,9,200], index: 3, kind: output, shape index: {}]
  %s4 = sld [smem:[#allocation0]]
  $region57: #{causal_stft_forward.1} parent=0
    _
  %s6 = ssub.s32 1, %s4
  %s7 = scalar_select 0, %s6, %s4
  $region1: #{causal_stft_forward.1} parent=0
    #allocation2 [shape = 'u8[131072]{0}', space=vmem, size = 0x20000, scoped, tag = 'input window, operand 0']
    #allocation3 [shape = 's32[2]{0}', space=sflag, size = 0x8, scoped, tag = 'scoped memory for causal_stft_forward.1']
    #allocation4 [shape = 's32[2]{0}', space=sflag, size = 0x8, scoped, tag = 'scoped memory for causal_stft_forward.1']
    #allocation5 [shape = 'u8[8192]{0}', space=vmem, size = 0x2000, scoped, tag = 'input window, operand 1']
    #allocation6 [shape = 's32[2]{0}', space=sflag, size = 0x8, scoped, tag = 'scoped memory for causal_stft_forward.1']
    #allocation7 [shape = 'u8[8192]{0}', space=vmem, size = 0x2000, scoped, tag = 'input window, operand 2, single buffered']
    #allocation8 [shape = 'u8[16384]{0}', space=vmem, size = 0x4000, scoped, tag = 'output window, operand 0']
    %8 = vsyncpa [#allocation3], 0
    %s9 = scalar_lea.sflag [#allocation3], 1
    %10 = vsyncpa %s9, 0
    %11 = vsyncpa [#allocation6], 0
    %s12 = scalar_lea.sflag [#allocation6], 1
    %13 = vsyncpa %s12, 0
    %14 = vsyncpa [#allocation4], 0
    %s15 = scalar_lea.sflag [#allocation4], 1
    %16 = vsyncpa %s15, 0
    loop: start=0, step=1, limit=6
    $region2: #{causal_stft_forward.1} parent=1 // loop_pre_header
      _
    $region3: #{causal_stft_forward.1} parent=1 // loop_header
      %s18 = sphi 0, %s22
      %p19 = scmp.ge.s32.totalorder %s18, 6
      %s25 = sphi 0, %s37
      %s26 = sphi 0, %s33
      %s27 = sphi 0, %s25
      %s28 = sphi 0, %s26
      %s29 = sphi 0, %s27
      %s30 = sphi 0, %s28
      %s42 = sphi 0, %s44
      %s45 = sphi 0, %s42
      %s46 = sphi 0, %s45
      %s62 = sphi 0, %s46
      %s74 = sphi 0, %s76
      %s77 = sphi 0, %s74
      %s78 = sphi 0, %s77
      %s94 = sphi 0, %s78
      %s98 = sphi 0, %s98
      %s100 = sphi 0, %s98
      %s101 = sphi 0, %s100
      %s115 = sphi 0, %s101
      %s123 = sphi 0, %s125
      %s126 = sphi 0, %s123
      %s127 = sphi 0, %s126
      %s143 = sphi 0, %s127
    $region4: #{causal_stft_forward.1} parent=1 // loop_header_branch
      %21 = sbr.rel (%p19) target = $region8
    $region5: #{causal_stft_forward.1} parent=1 // loop_body
      %s23 = ssub.s32 %s18, 1
      %s24 = ssub.s32 %s18, 2
      %s31 = sadd.s32 1, %s26
      %p32 = scmp.ge.s32.totalorder %s31, 2
      %s33 = scalar_select %p32, 0, %s31
      %s34 = sadd.s32 1, %s25
      %s35 = scalar_select %p32, %s34, %s25
      %p36 = scmp.ge.s32.totalorder %s35, 2
      %s37 = scalar_select %p36, 0, %s35
      %s38 = ssub.s32 %s25, %s37
      %s39 = ssub.s32 %s26, %s33
      %s40 = sor.u32 %s38, %s39
      %p41 = scmp.eq.s32.totalorder %s40, 0
      %s43 = sadd.s32 %s42, 1
      %s44 = scalar_select %p41, %s42, %s43
      %p47 = pneg %p41
      %p48 = scmp.eq.s32.totalorder %s18, 3
      %p49 = por %p47, %p48
      %p50 = scmp.ne.s32.totalorder %s42, %s45
      %p51 = scmp.eq.s32.totalorder %s18, 0
      %p52 = por %p50, %p51
      %p53 = scmp.ne.s32.totalorder %s42, %s45
      %p54 = scmp.eq.s32.totalorder %s23, 3
      %p55 = por %p53, %p54
      %p56 = scmp.ne.s32.totalorder %s45, %s46
      %p57 = scmp.eq.s32.totalorder %s23, 0
      %p58 = por %p56, %p57
      %p59 = scmp.ne.s32.totalorder %s45, %s46
      %p60 = scmp.eq.s32.totalorder %s24, 3
      %p61 = por %p59, %p60
      %p63 = scmp.ne.s32.totalorder %s46, %s62
      %p64 = scmp.eq.s32.totalorder %s24, 0
      %p65 = por %p63, %p64
      %s66 = sadd.s32 %s26, 1
      %s67 = smul.u32 %s66, 16
      %s68 = sadd.s32 %s33, 1
      %s69 = smul.u32 %s68, 16
      %s70 = ssub.s32 %s25, %s37
      %s71 = ssub.s32 %s67, %s69
      %s72 = sor.u32 %s70, %s71
      %p73 = scmp.eq.s32.totalorder %s72, 0
      %s75 = sadd.s32 %s74, 1
      %s76 = scalar_select %p73, %s74, %s75
      %p79 = pneg %p73
      %p80 = scmp.eq.s32.totalorder %s18, 3
      %p81 = por %p79, %p80
      %p82 = scmp.ne.s32.totalorder %s74, %s77
      %p83 = scmp.eq.s32.totalorder %s18, 0
      %p84 = por %p82, %p83
      %p85 = scmp.ne.s32.totalorder %s74, %s77
      %p86 = scmp.eq.s32.totalorder %s23, 3
      %p87 = por %p85, %p86
      %p88 = scmp.ne.s32.totalorder %s77, %s78
      %p89 = scmp.eq.s32.totalorder %s23, 0
      %p90 = por %p88, %p89
      %p91 = scmp.ne.s32.totalorder %s77, %s78
      %p92 = scmp.eq.s32.totalorder %s24, 3
      %p93 = por %p91, %p92
      %p95 = scmp.ne.s32.totalorder %s78, %s94
      %p96 = scmp.eq.s32.totalorder %s24, 0
      %p97 = por %p95, %p96
      %s99 = sadd.s32 %s98, 1
      %p102 = scmp.eq.s32.totalorder %s18, 3
      %p103 = scmp.ne.s32.totalorder %s98, %s100
      %p104 = scmp.eq.s32.totalorder %s18, 0
      %p105 = por %p103, %p104
      %p106 = scmp.ne.s32.totalorder %s98, %s100
      %p107 = scmp.eq.s32.totalorder %s23, 3
      %p108 = por %p106, %p107
      %p109 = scmp.ne.s32.totalorder %s100, %s101
      %p110 = scmp.eq.s32.totalorder %s23, 0
      %p111 = por %p109, %p110
      %p112 = scmp.ne.s32.totalorder %s100, %s101
      %p113 = scmp.eq.s32.totalorder %s24, 3
      %p114 = por %p112, %p113
      %p116 = scmp.ne.s32.totalorder %s101, %s115
      %p117 = scmp.eq.s32.totalorder %s24, 0
      %p118 = por %p116, %p117
      %s119 = ssub.s32 %s25, %s37
      %s120 = ssub.s32 %s26, %s33
      %s121 = sor.u32 %s119, %s120
      %p122 = scmp.eq.s32.totalorder %s121, 0
      %s124 = sadd.s32 %s123, 1
      %s125 = scalar_select %p122, %s123, %s124
      %p128 = pneg %p122
      %p129 = scmp.eq.s32.totalorder %s18, 3
      %p130 = por %p128, %p129
      %p131 = scmp.ne.s32.totalorder %s123, %s126
      %p132 = scmp.eq.s32.totalorder %s18, 0
      %p133 = por %p131, %p132
      %p134 = scmp.ne.s32.totalorder %s123, %s126
      %p135 = scmp.eq.s32.totalorder %s23, 3
      %p136 = por %p134, %p135
      %p137 = scmp.ne.s32.totalorder %s126, %s127
      %p138 = scmp.eq.s32.totalorder %s23, 0
      %p139 = por %p137, %p138
      %p140 = scmp.ne.s32.totalorder %s126, %s127
      %p141 = scmp.eq.s32.totalorder %s24, 3
      %p142 = por %p140, %p141
      %p144 = scmp.ne.s32.totalorder %s127, %s143
      %p145 = scmp.eq.s32.totalorder %s24, 0
      %p146 = por %p144, %p145
      %p147 = scmp.le.s32.totalorder 1, %s18
      %p148 = scmp.lt.s32.totalorder %s18, 5
      %p149 = pnand %p147, %p148
      %p150 = pneg %p149
      // Predicated region
      $region9: #{causal_stft_forward.1} parent=5 // pred_check
        _
      $region10: #{causal_stft_forward.1} parent=5 // pred_check_branch
        %152 = sbr.rel (%p149) target = $region12
      $region11: #{causal_stft_forward.1} parent=5 // pred_region
        %s153 = ssub.s32 %s18, 1
        // Predicated region
        $region13: #{causal_stft_forward.1} parent=11 // pred_check
          %p154 = pneg %p111
        $region14: #{causal_stft_forward.1} parent=11 // pred_check_branch
          %156 = sbr.rel (%p154) target = $region16
        $region15: #{causal_stft_forward.1} parent=11 // pred_region
          %s158 = ssub.s32 256, 256
          %159 = vsyncadd [#allocation6], %s158
          %s160 = sshll.u32 [#allocation7], 4
          %s161 = int_to_ptr.vmem [resolvable:$true] %s160
          %166 = dma.hbm_to_vmem [thread:$0]  %s2, 256, %s161, [#allocation6], 64, 64, 4
        $region16: #{causal_stft_forward.1} parent=11 // pred_fallthru
          _
      $region12: #{causal_stft_forward.1} parent=5 // pred_fallthru
        _
      %p167 = scmp.lt.s32.totalorder %s18, 4
      // Predicated region
      $region17: #{causal_stft_forward.1} parent=5 // pred_check
        %p168 = pneg %p167
      $region18: #{causal_stft_forward.1} parent=5 // pred_check_branch
        %170 = sbr.rel (%p168) target = $region20
      $region19: #{causal_stft_forward.1} parent=5 // pred_region
        // Predicated region
        $region21: #{causal_stft_forward.1} parent=19 // pred_check
          %p171 = pneg %p52
        $region22: #{causal_stft_forward.1} parent=19 // pred_check_branch
          %173 = sbr.rel (%p171) target = $region24
        $region23: #{causal_stft_forward.1} parent=19 // pred_region
          %s174 = sand.u32 %s42, 1
          %s175 = scalar_lea.sflag [#allocation3], %s174
          %s176 = sand.u32 %s42, 1
          %s177 = smul.addr %s176, 128
          %s178 = scalar_lea.vmem [#allocation2], %s177
          %s179 = smul.u32 16, %s26
          %s180 = ssub.s32 33, %s179
          %p181 = scmp.lt.s32.totalorder %s180, 16
          %s182 = scalar_select %p181, %s180, 16
          %s183 = smul.u32 128, %s182
          %s185 = ssub.s32 2048, %s183
          %186 = vsyncadd %s175, %s185
          %p187 = scmp.ne.s32.totalorder 0, %s183
          %s188 = smul.addr %s25, 33
          %s189 = sadd.s32 %s179, %s188
          %s190 = smul.addr %s189, 128
          %s191 = scalar_lea.hbm %s0, %s190
          %s192 = smul.u32 8, %s182
          %s193 = sshll.u32 %s178, 4
          %s194 = int_to_ptr.vmem [resolvable:$true] %s193
          %s195 = sshll.u32 %s192, 4
          %199 = dma.hbm_to_vmem [thread:$0]  (%p187), %s191, %s195, %s194, %s175, 128, 128, 8
        $region24: #{causal_stft_forward.1} parent=19 // pred_fallthru
          _
        // Predicated region
        $region25: #{causal_stft_forward.1} parent=19 // pred_check
          %p200 = pneg %p84
        $region26: #{causal_stft_forward.1} parent=19 // pred_check_branch
          %202 = sbr.rel (%p200) target = $region28
        $region27: #{causal_stft_forward.1} parent=19 // pred_region
          %s203 = sand.u32 %s18, 1
          %s204 = scalar_lea.sflag [#allocation6], %s203
          %s205 = sand.u32 %s74, 1
          %s206 = smul.addr %s205, 8
          %s207 = scalar_lea.vmem [#allocation5], %s206
          %s208 = sadd.s32 %s26, 1
          %s209 = smul.u32 %s208, 16
          %s211 = ssub.s32 128, 128
          %212 = vsyncadd %s204, %s211
          %s213 = smul.addr %s25, 33
          %s214 = sadd.s32 %s209, %s213
          %s215 = smul.addr %s214, 128
          %s216 = scalar_lea.hbm %s1, %s215
          %s218 = sshll.u32 %s207, 4
          %s219 = int_to_ptr.vmem [resolvable:$true] %s218
          %221 = dma.hbm_to_vmem [thread:$0]  %s216, 128, %s219, %s204
        $region28: #{causal_stft_forward.1} parent=19 // pred_fallthru
          _
      $region20: #{causal_stft_forward.1} parent=5 // pred_fallthru
        _
      %p222 = scmp.le.s32.totalorder 1, %s18
      %p223 = scmp.lt.s32.totalorder %s18, 5
      %p224 = pnand %p222, %p223
      %p225 = pneg %p224
      // Predicated region
      $region29: #{causal_stft_forward.1} parent=5 // pred_check
        _
      $region30: #{causal_stft_forward.1} parent=5 // pred_check_branch
        %227 = sbr.rel (%p224) target = $region32
      $region31: #{causal_stft_forward.1} parent=5 // pred_region
        %s228 = ssub.s32 %s18, 1
        %s229 = sand.u32 %s45, 1
        %s230 = scalar_lea.sflag [#allocation3], %s229
        %s231 = sand.u32 %s45, 1
        %s232 = smul.addr %s231, 128
        %s233 = scalar_lea.vmem [#allocation2], %s232
        // Predicated region
        $region33: #{causal_stft_forward.1} parent=31 // pred_check
          %p234 = pneg %p58
        $region34: #{causal_stft_forward.1} parent=31 // pred_check_branch
          %236 = sbr.rel (%p234) target = $region36
        $region35: #{causal_stft_forward.1} parent=31 // pred_region
          %237 = dma.done %s230, 2048
        $region36: #{causal_stft_forward.1} parent=31 // pred_fallthru
          _
        %s238 = sand.u32 %s23, 1
        %s239 = scalar_lea.sflag [#allocation6], %s238
        %s240 = sand.u32 %s77, 1
        %s241 = smul.addr %s240, 8
        %s242 = scalar_lea.vmem [#allocation5], %s241
        // Predicated region
        $region37: #{causal_stft_forward.1} parent=31 // pred_check
          %p243 = pneg %p90
        $region38: #{causal_stft_forward.1} parent=31 // pred_check_branch
          %245 = sbr.rel (%p243) target = $region40
        $region39: #{causal_stft_forward.1} parent=31 // pred_region
          %246 = dma.done %s239, 128
        $region40: #{causal_stft_forward.1} parent=31 // pred_fallthru
          _
        // Predicated region
        $region41: #{causal_stft_forward.1} parent=31 // pred_check
          %p247 = pneg %p111
        $region42: #{causal_stft_forward.1} parent=31 // pred_check_branch
          %249 = sbr.rel (%p247) target = $region44
        $region43: #{causal_stft_forward.1} parent=31 // pred_region
          %250 = dma.done [#allocation6], 256
        $region44: #{causal_stft_forward.1} parent=31 // pred_fallthru
          _
        %s251 = sand.u32 %s45, 1
        %s252 = scalar_lea.sflag [#allocation3], %s251
        %s253 = sand.u32 %s45, 1
        %s254 = smul.addr %s253, 128
        %s255 = scalar_lea.vmem [#allocation2], %s254
        %p256 = pneg %p58
        %p257 = pneg %p55
        %s258 = sand.u32 %s23, 1
        %s259 = scalar_lea.sflag [#allocation6], %s258
        %s260 = sand.u32 %s77, 1
        %s261 = smul.addr %s260, 8
        %s262 = scalar_lea.vmem [#allocation5], %s261
        %p263 = pneg %p90
        %p264 = pneg %p87
        %p265 = pneg %p111
        %p266 = pneg %p108
        %p267 = pneg %p139
        %p268 = pneg %p136
        %s269 = sand.u32 %s126, 1
        %s270 = scalar_lea.sflag [#allocation4], %s269
        %s271 = sand.u32 %s126, 1
        %s272 = smul.addr %s271, 16
        %s273 = scalar_lea.vmem [#allocation8], %s272
        %s274 = smul.u32 16, %s28
        %s275 = ssub.s32 33, %s274
        %p276 = scmp.lt.s32.totalorder %s275, 16
        %s277 = scalar_select %p276, %s275, 16
        %s278 = smul.u32 128, %s277
        %s279 = sadd.s32 %s28, 1
        %s280 = smul.u32 %s279, 16
        %v282 = vld [vmem:[%s233] sm:$0xff]
        %v283 = vld [vmem:[%s233 + $0x8] sm:$0xff]
        %v284 = vld [vmem:[%s233 + $0x10] sm:$0xff]
        %v285 = vld [vmem:[%s233 + $0x18] sm:$0xff]
        %v286 = vld [vmem:[%s233 + $0x20] sm:$0xff]
        %v287 = vld [vmem:[%s233 + $0x28] sm:$0xff]
        %v288 = vld [vmem:[%s233 + $0x30] sm:$0xff]
        %v289 = vld [vmem:[%s233 + $0x38] sm:$0xff]
        %v290 = vld [vmem:[%s233 + $0x40] sm:$0xff]
        %v291 = vld [vmem:[%s233 + $0x48] sm:$0xff]
        %v292 = vld [vmem:[%s233 + $0x50] sm:$0xff]
        %v293 = vld [vmem:[%s233 + $0x58] sm:$0xff]
        %v294 = vld [vmem:[%s233 + $0x60] sm:$0xff]
        %v295 = vld [vmem:[%s233 + $0x68] sm:$0xff]
        %v296 = vld [vmem:[%s233 + $0x70] sm:$0xff]
        %v297 = vld [vmem:[%s233 + $0x78] sm:$0xff]
        %v298 = vpack.c.bf16 %v283, %v282
        %v299 = vpack.c.bf16 %v285, %v284
        %v300 = vpack.c.bf16 %v287, %v286
        %v301 = vpack.c.bf16 %v289, %v288
        %v302 = vpack.c.bf16 %v291, %v290
        %v303 = vpack.c.bf16 %v293, %v292
        %v304 = vpack.c.bf16 %v295, %v294
        %v305 = vpack.c.bf16 %v297, %v296
        %v306 = vld [vmem:[%s242] sm:$0xff]
        %v307 = vpack.c.bf16 %v306, %v306
        %vm308 = vsmask.f32 7424
        %v310 = vshrl.u32 %v298, 16
        %v312 = vshll.u32 %v298, 16
        %v314 = vrot.slane %v312, 1
        %v315 = vor.u32 %v310, %v314
        %v317 = vshll.u32 %v299, 16
        %v319 = vrot.slane %v317, 1
        %v320 = vsel %vm308, %v315, %v319
        %v321 = vshrl.u32 %v299, 16
        %v323 = vor.u32 %v321, %v319
        %v325 = vshll.u32 %v300, 16
        %v327 = vrot.slane %v325, 1
        %v328 = vsel %vm308, %v323, %v327
        %v329 = vshrl.u32 %v300, 16
        %v331 = vor.u32 %v329, %v327
        %v333 = vshll.u32 %v301, 16
        %v335 = vrot.slane %v333, 1
        %v336 = vsel %vm308, %v331, %v335
        %v337 = vshrl.u32 %v301, 16
        %v339 = vor.u32 %v337, %v335
        %v341 = vshll.u32 %v302, 16
        %v343 = vrot.slane %v341, 1
        %v344 = vsel %vm308, %v339, %v343
        %v345 = vshrl.u32 %v302, 16
        %v347 = vor.u32 %v345, %v343
        %v349 = vshll.u32 %v303, 16
        %v351 = vrot.slane %v349, 1
        %v352 = vsel %vm308, %v347, %v351
        %v353 = vshrl.u32 %v303, 16
        %v355 = vor.u32 %v353, %v351
        %v357 = vshll.u32 %v304, 16
        %v359 = vrot.slane %v357, 1
        %v360 = vsel %vm308, %v355, %v359
        %v361 = vshrl.u32 %v304, 16
        %v363 = vor.u32 %v361, %v359
        %v365 = vshll.u32 %v305, 16
        %v367 = vrot.slane %v365, 1
        %v368 = vsel %vm308, %v363, %v367
        %v369 = vshrl.u32 %v305, 16
        %v371 = vor.u32 %v369, %v367
        %v373 = vshll.u32 %v307, 16
        %v375 = vrot.slane %v373, 1
        %v376 = vsel %vm308, %v371, %v375
        %377 = vrot.lane.b32.xlu0 %v320, 4
        %v378 = vpop.permute.xlu0 %377
        %379 = vrot.lane.b32.xlu0 %v328, 4
        %v380 = vpop.permute.xlu0 %379
        %381 = vrot.lane.b32.xlu0 %v336, 4
        %v382 = vpop.permute.xlu0 %381
        %383 = vrot.lane.b32.xlu0 %v344, 4
        %v384 = vpop.permute.xlu0 %383
        %385 = vrot.lane.b32.xlu0 %v352, 4
        %v386 = vpop.permute.xlu0 %385
        %387 = vrot.lane.b32.xlu0 %v360, 4
        %v388 = vpop.permute.xlu0 %387
        %389 = vrot.lane.b32.xlu0 %v368, 4
        %v390 = vpop.permute.xlu0 %389
        %391 = vrot.lane.b32.xlu0 %v376, 4
        %v392 = vpop.permute.xlu0 %391
        %vm402 = vcmask 1046528
        %v403 = vrot.slane %v298, 1
        %v404 = vrot.slane %v299, 1
        %v405 = vsel %vm402, %v403, %v404
        %v406 = vrot.slane %v300, 1
        %v407 = vsel %vm402, %v404, %v406
        %v408 = vrot.slane %v301, 1
        %v409 = vsel %vm402, %v406, %v408
        %v410 = vrot.slane %v302, 1
        %v411 = vsel %vm402, %v408, %v410
        %v412 = vrot.slane %v303, 1
        %v413 = vsel %vm402, %v410, %v412
        %v414 = vrot.slane %v304, 1
        %v415 = vsel %vm402, %v412, %v414
        %v416 = vrot.slane %v305, 1
        %v417 = vsel %vm402, %v414, %v416
        %v418 = vrot.slane %v307, 1
        %v419 = vsel %vm402, %v416, %v418
        %420 = vrot.lane.b32.xlu0 %v405, 8
        %v421 = vpop.permute.xlu0 %420
        %422 = vrot.lane.b32.xlu0 %v407, 8
        %v423 = vpop.permute.xlu0 %422
        %424 = vrot.lane.b32.xlu0 %v409, 8
        %v425 = vpop.permute.xlu0 %424
        %426 = vrot.lane.b32.xlu0 %v411, 8
        %v427 = vpop.permute.xlu0 %426
        %428 = vrot.lane.b32.xlu0 %v413, 8
        %v429 = vpop.permute.xlu0 %428
        %430 = vrot.lane.b32.xlu0 %v415, 8
        %v431 = vpop.permute.xlu0 %430
        %432 = vrot.lane.b32.xlu0 %v417, 8
        %v433 = vpop.permute.xlu0 %432
        %434 = vrot.lane.b32.xlu0 %v419, 8
        %v435 = vpop.permute.xlu0 %434
        %vm436 = vsmask.f32 6400
        %v437 = vrot.slane %v310, 1
        %v438 = vrot.slane %v312, 2
        %v439 = vor.u32 %v437, %v438
        %v440 = vrot.slane %v321, 1
        %v441 = vrot.slane %v317, 2
        %v442 = vor.u32 %v440, %v441
        %v443 = vsel %vm436, %v439, %v442
        %v444 = vrot.slane %v329, 1
        %v445 = vrot.slane %v325, 2
        %v446 = vor.u32 %v444, %v445
        %v447 = vsel %vm436, %v442, %v446
        %v448 = vrot.slane %v337, 1
        %v449 = vrot.slane %v333, 2
        %v450 = vor.u32 %v448, %v449
        %v451 = vsel %vm436, %v446, %v450
        %v452 = vrot.slane %v345, 1
        %v453 = vrot.slane %v341, 2
        %v454 = vor.u32 %v452, %v453
        %v455 = vsel %vm436, %v450, %v454
        %v456 = vrot.slane %v353, 1
        %v457 = vrot.slane %v349, 2
        %v458 = vor.u32 %v456, %v457
        %v459 = vsel %vm436, %v454, %v458
        %v460 = vrot.slane %v361, 1
        %v461 = vrot.slane %v357, 2
        %v462 = vor.u32 %v460, %v461
        %v463 = vsel %vm436, %v458, %v462
        %v464 = vrot.slane %v369, 1
        %v465 = vrot.slane %v365, 2
        %v466 = vor.u32 %v464, %v465
        %v467 = vsel %vm436, %v462, %v466
        %v468 = vshrl.u32 %v307, 16
        %v470 = vrot.slane %v468, 1
        %v471 = vrot.slane %v373, 2
        %v472 = vor.u32 %v470, %v471
        %v473 = vsel %vm436, %v466, %v472
        %474 = vrot.lane.b32.xlu0 %v443, 12
        %v475 = vpop.permute.xlu0 %474
        %476 = vrot.lane.b32.xlu0 %v447, 12
        %v477 = vpop.permute.xlu0 %476
        %478 = vrot.lane.b32.xlu0 %v451, 12
        %v479 = vpop.permute.xlu0 %478
        %480 = vrot.lane.b32.xlu0 %v455, 12
        %v481 = vpop.permute.xlu0 %480
        %482 = vrot.lane.b32.xlu0 %v459, 12
        %v483 = vpop.permute.xlu0 %482
        %484 = vrot.lane.b32.xlu0 %v463, 12
        %v485 = vpop.permute.xlu0 %484
        %486 = vrot.lane.b32.xlu0 %v467, 12
        %v487 = vpop.permute.xlu0 %486
        %488 = vrot.lane.b32.xlu0 %v473, 12
        %v489 = vpop.permute.xlu0 %488
        %vm490 = vcmask 31744
        %v492 = vsel %vm490, %v298, %v378
        %v494 = vsel %vm490, %v299, %v380
        %v496 = vsel %vm490, %v300, %v382
        %v498 = vsel %vm490, %v301, %v384
        %v500 = vsel %vm490, %v302, %v386
        %v502 = vsel %vm490, %v303, %v388
        %v504 = vsel %vm490, %v304, %v390
        %v506 = vsel %vm490, %v305, %v392
        %vm507 = vcmask 64512
        %v509 = vsel %vm507, %v492, %v421
        %v511 = vsel %vm507, %v494, %v423
        %v513 = vsel %vm507, %v496, %v425
        %v515 = vsel %vm507, %v498, %v427
        %v517 = vsel %vm507, %v500, %v429
        %v519 = vsel %vm507, %v502, %v431
        %v521 = vsel %vm507, %v504, %v433
        %v523 = vsel %vm507, %v506, %v435
        %vm524 = vcmask 97280
        %v526 = vsel %vm524, %v509, %v475
        %v528 = vsel %vm524, %v511, %v477
        %v530 = vsel %vm524, %v513, %v479
        %v532 = vsel %vm524, %v515, %v481
        %v534 = vsel %vm524, %v517, %v483
        %v536 = vsel %vm524, %v519, %v485
        %v538 = vsel %vm524, %v521, %v487
        %v540 = vsel %vm524, %v523, %v489
        %v541 = vld [vmem:[#allocation7] sm:$0xf]
        %v542 = vld [vmem:[#allocation7 + $0x4] sm:$0xf]
        %v543 = vld [vmem:[#allocation7 + $0x8] sm:$0xf]
        %v544 = vld [vmem:[#allocation7 + $0xc] sm:$0xf]
        %v549 = vunpack.c.l.b16 %v541
        %v550 = vunpack.c.l.b16 %v542
        %v551 = vunpack.c.l.b16 %v543
        %v552 = vunpack.c.l.b16 %v544
        %v553 = vpack.c.b16 %v550, %v549
        %v554 = vpack.c.b16 %v552, %v551
        %vm555 = vcmask 130048
        %v557 = vsel %vm555, %v553, 0
        %v560 = vsel %vm555, %v554, 0
        %v562 = vsel %vm555, %v526, 0
        %v564 = vsel %vm555, %v528, 0
        %v566 = vsel %vm555, %v530, 0
        %v568 = vsel %vm555, %v532, 0
        %v570 = vsel %vm555, %v534, 0
        %v572 = vsel %vm555, %v536, 0
        %v574 = vsel %vm555, %v538, 0
        %v576 = vsel %vm555, %v540, 0
        %578 = vmatprep.subr.bf16.mxu0 0
        %579 = vmatpush1.bf16.xpose.msra.mxu0 %v562
        %580 = vmatprep.subr.bf16.mxu0 0
        %581 = vmatpush1.bf16.xpose.msra.mxu0 %v564
        %582 = vmatprep.subr.bf16.mxu0 0
        %583 = vmatpush1.bf16.xpose.msra.mxu0 %v566
        %584 = vmatprep.subr.bf16.mxu0 0
        %585 = vmatpush1.bf16.xpose.msra.mxu0 %v568
        %586 = vmatprep.subr.bf16.mxu0 0
        %587 = vmatpush1.bf16.xpose.msra.mxu0 %v570
        %588 = vmatprep.subr.bf16.mxu0 0
        %589 = vmatpush1.bf16.xpose.msra.mxu0 %v572
        %590 = vmatprep.subr.bf16.mxu0 0
        %591 = vmatpush1.bf16.xpose.msra.mxu0 %v574
        %592 = vmatprep.subr.bf16.mxu0 0
        %593 = vmatpush1.bf16.xpose.msra.mxu0 %v576
        %594 = vmatprep.subr.bf16.mxu0 0
        %595 = vmatpush1.bf16.xpose.msra.mxu0 0
        %596 = vmatprep.subr.bf16.mxu0 0
        %597 = vmatpush1.bf16.xpose.msra.mxu0 0
        %598 = vmatprep.subr.bf16.mxu0 0
        %599 = vmatpush1.bf16.xpose.msra.mxu0 0
        %600 = vmatprep.subr.bf16.mxu0 0
        %601 = vmatpush1.bf16.xpose.msra.mxu0 0
        %602 = vmatprep.subr.bf16.mxu0 0
        %603 = vmatpush1.bf16.xpose.msra.mxu0 0
        %604 = vmatprep.subr.bf16.mxu0 0
        %605 = vmatpush1.bf16.xpose.msra.mxu0 0
        %606 = vmatprep.subr.bf16.mxu0 0
        %607 = vmatpush1.bf16.xpose.msra.mxu0 0
        %608 = vmatprep.subr.bf16.mxu0 0
        %609 = vmatpush1.bf16.xpose.msra.mxu0 0
        %610 = vmatprep.mubr.bf16.mxu0 0
        %611 = vmatmul.mubr.bf16.gmra.mrb[0].mxu0 %v557
        %v612 = vpop.f32.mrb[0].mxu0
        %v613 = vadd.f32 0.0, %v612
        %v614 = vpop.f32.mrb[0].mxu0
        %v615 = vpop.f32.mrb[0].mxu0
        %v616 = vadd.f32 0.0, %v615
        %v617 = vpop.f32.mrb[0].mxu0
        %618 = vmatprep.mubr.bf16.mxu0 0
        %619 = vmatmul.mubr.bf16.gmra.mrb[0].mxu0 %v560
        %v620 = vpop.f32.mrb[0].mxu0
        %v621 = vadd.f32 0.0, %v620
        %v622 = vpop.f32.mrb[0].mxu0
        %v623 = vpop.f32.mrb[0].mxu0
        %v624 = vadd.f32 0.0, %v623
        %v625 = vpop.f32.mrb[0].mxu0
        %626 = vdwg.mxu0
        %v627 = vmul.f32 %v613, %v613
        %v628 = vmul.f32 %v616, %v616
        %v629 = vmul.f32 %v621, %v621
        %v630 = vmul.f32 %v624, %v624
        %v631 = vadd.f32 %v627, %v629
        %v632 = vadd.f32 %v628, %v630
        %v633 = vrsqrt.pop %v631
        %v634 = vmul.f32 %v631, %v633
        %vm635 = vcmp.eq.f32.partialorder %v631, inf
        %v636 = vsel %vm635, %v631, %v634
        %vm637 = vcmp.eq.f32.partialorder %v631, 0.0
        %v638 = vand.u32 %v631, 2147483648
        %v639 = vsel %vm637, %v638, %v636
        %v640 = vrsqrt.pop %v632
        %v641 = vmul.f32 %v632, %v640
        %vm642 = vcmp.eq.f32.partialorder %v632, inf
        %v643 = vsel %vm642, %v632, %v641
        %vm644 = vcmp.eq.f32.partialorder %v632, 0.0
        %v645 = vand.u32 %v632, 2147483648
        %v646 = vsel %vm644, %v645, %v643
        %647 = vst [vmem:[%s273] sm:$0xff] %v639
        %648 = vst [vmem:[%s273 + $0x8] sm:$0x1] %v646
        %s649 = sand.u32 %s126, 1
        %s650 = scalar_lea.sflag [#allocation4], %s649
        %s651 = sand.u32 %s126, 1
        %s652 = smul.addr %s651, 16
        %s653 = scalar_lea.vmem [#allocation8], %s652
        // Predicated region
        $region45: #{causal_stft_forward.1} parent=31 // pred_check
          %p654 = pneg %p136
        $region46: #{causal_stft_forward.1} parent=31 // pred_check_branch
          %656 = sbr.rel (%p654) target = $region48
        $region47: #{causal_stft_forward.1} parent=31 // pred_region
          %s658 = ssub.s32 256, 256
          %659 = vsyncadd %s650, %s658
          %s660 = smul.addr %s27, 4
          %s661 = sadd.s32 %s28, %s660
          %s662 = smul.addr %s661, 128
          %s663 = scalar_lea.hbm %s3, %s662
          %s664 = sshll.u32 %s653, 4
          %s665 = int_to_ptr.vmem [resolvable:$true] %s664
          %670 = dma.vmem_to_hbm [thread:$0]  %s665, 256, %s663, %s650, 128, 256, 8
        $region48: #{causal_stft_forward.1} parent=31 // pred_fallthru
          _
      $region32: #{causal_stft_forward.1} parent=5 // pred_fallthru
        _
      %p671 = scmp.le.s32.totalorder 2, %s18
      // Predicated region
      $region49: #{causal_stft_forward.1} parent=5 // pred_check
        %p672 = pneg %p671
      $region50: #{causal_stft_forward.1} parent=5 // pred_check_branch
        %674 = sbr.rel (%p672) target = $region52
      $region51: #{causal_stft_forward.1} parent=5 // pred_region
        %s675 = ssub.s32 %s18, 2
        // Predicated region
        $region53: #{causal_stft_forward.1} parent=51 // pred_check
          %p676 = pneg %p142
        $region54: #{causal_stft_forward.1} parent=51 // pred_check_branch
          %678 = sbr.rel (%p676) target = $region56
        $region55: #{causal_stft_forward.1} parent=51 // pred_region
          %s679 = sand.u32 %s127, 1
          %s680 = scalar_lea.sflag [#allocation4], %s679
          %s681 = sand.u32 %s127, 1
          %s682 = smul.addr %s681, 16
          %s683 = scalar_lea.vmem [#allocation8], %s682
          %684 = dma.done %s680, 256
        $region56: #{causal_stft_forward.1} parent=51 // pred_fallthru
          _
      $region52: #{causal_stft_forward.1} parent=5 // pred_fallthru
        _
    $region6: #{causal_stft_forward.1} parent=1 // loop_footer
      %s22 = sadd.s32 1, %s18
    $region7: #{causal_stft_forward.1} parent=1 // loop_footer_branch
      %17 = sbr.rel target = $region3
    $region8: #{causal_stft_forward.1} parent=1 // loop_exit
      _
    %685 = vsyncpa [#allocation3], 1
    %s686 = scalar_lea.sflag [#allocation3], 1
    %687 = vsyncpa %s686, 1
    %688 = vsyncpa [#allocation6], 1
    %s689 = scalar_lea.sflag [#allocation6], 1
    %690 = vsyncpa %s689, 1
    %691 = vsyncpa [#allocation4], 1
    %s692 = scalar_lea.sflag [#allocation4], 1
    %693 = vsyncpa %s692, 1

</llo_original>
